<compile_context>
chip_gen: v5e
topology: v5e:2x2
jax: 0.10.0
libtpu: 0.0.40
codegen_flags: <defaults>
</compile_context>

<pallas_src>
import jax
import jax.numpy as jnp
import numpy as np
from jax.experimental import pallas as pl
from jax.experimental.pallas import tpu as pltpu

_LANE = 1024                     # lane-dense last dim for the flatten fallback
_MAX_TILE_COLS = 8192            # cap on the lane-width of a tile (mult. of 128)
_TARGET_TILE_ELEMS = 1 << 20     # ~1M elems/tile (4 MiB f32); 2x-buffered io + f32
                                 # intermediates stay well under the VMEM limit
_VMEM_LIMIT_BYTES = 48 * 1024 * 1024   # explicit scoped-VMEM; safe on v5e/v6e
                                       # (128 MiB phys) and v7x (64 MiB phys)


def _tanh_multiplier_kernel(s_ref, x_ref, o_ref):
    # s_ref: (2,) f32 in SMEM -> [exp(m), 1/exp(m)], precomputed in the wrapper.
    # x_ref / o_ref: (tile_rows, tile_cols) tiles in the input's native dtype.
    em = s_ref[0]
    inv = s_ref[1]
    x = x_ref[...].astype(jnp.float32)          # f32 compute (v5e VPU/EUP need it)
    o_ref[...] = (jnp.tanh(x * inv) * em).astype(o_ref.dtype)


def _round_up(v, m):
    return ((v + m - 1) // m) * m


def _tile_rows(rows, tile_cols):
    """Row-tile size: ~_TARGET_TILE_ELEMS elements per tile, multiple of 8
    (or the full row count when the array is smaller than one tile)."""
    if rows <= 8:
        return rows                               # full dim -> always legal
    tr = max(8, (_TARGET_TILE_ELEMS // tile_cols) // 8 * 8)
    return min(tr, rows)                          # == rows is full-dim, legal


def _run_tiled(x2, scal):
    """Run the elementwise kernel over a 2-D (rows, cols) view, cols % 128 == 0."""
    rows, cols = x2.shape

    tc = cols if cols <= _MAX_TILE_COLS else _MAX_TILE_COLS
    tr = _tile_rows(rows, tc)

    # v7x has 2 TensorCores; the parallel grid is how work gets sharded across
    # them.  Guarantee >= 2 grid steps whenever there is enough work to split.
    if pl.cdiv(rows, tr) * pl.cdiv(cols, tc) < 2 and rows > 8:
        half = _round_up(-(-rows // 2), 8)        # ceil(rows/2) rounded to 8
        if half < rows:
            tr = half

    grid = (pl.cdiv(rows, tr), pl.cdiv(cols, tc))

    return pl.pallas_call(
        _tanh_multiplier_kernel,
        out_shape=jax.ShapeDtypeStruct((rows, cols), x2.dtype),
        grid_spec=pltpu.PrefetchScalarGridSpec(
            num_scalar_prefetch=0,
            grid=grid,
            in_specs=[
                # (2,) = [exp(m), 1/exp(m)] scalars, whole array in SMEM.
                pl.BlockSpec(memory_space=pltpu.MemorySpace.SMEM),
                # Lane-dense input tiles in the native dtype.  (If a profile
                # shows exposed DMA on very short v7x steps, bump this with
                # pipeline_mode=pl.Buffered(3) within the VMEM budget.)
                pl.BlockSpec((tr, tc), lambda i, j: (i, j)),
            ],
            out_specs=pl.BlockSpec((tr, tc), lambda i, j: (i, j)),
        ),
        compiler_params=pltpu.CompilerParams(
            dimension_semantics=("parallel", "parallel"),
            vmem_limit_bytes=_VMEM_LIMIT_BYTES,
        ),
    )(scal, x2)


def tanh_multiplier(x, multiplier):
    """Pallas forward of TanhMultiplier: tanh(x / exp(m)) * exp(m)."""
    orig_shape = x.shape

    # exp(m) and its reciprocal once, outside the kernel (tiny XLA scalar op).
    m = jnp.asarray(multiplier, jnp.float32).reshape(())
    em = jnp.exp(m)
    scal = jnp.stack([em, 1.0 / em]).astype(jnp.float32)      # (2,)

    if x.ndim >= 2 and x.shape[-1] % 128 == 0 and x.shape[-1] > 0:
        # Fast path: tile the original (lane-aligned) 2-D view directly.
        # Collapsing leading dims is a free, contiguity-preserving reshape;
        # no pad, no extra HBM passes.  Ragged edge blocks are masked by Pallas.
        cols = x.shape[-1]
        rows = int(np.prod(x.shape[:-1]))
        out2 = _run_tiled(x.reshape(rows, cols), scal)
        return out2.reshape(orig_shape)

    # Fallback: flatten + pad to a lane-dense (rows, _LANE) slab.  The pad
    # costs one extra HBM pass but only triggers for non-lane-aligned inputs.
    x_flat = x.reshape(-1)
    n = x_flat.shape[0]
    n_padded = pl.cdiv(n, _LANE) * _LANE
    if n_padded != n:
        x_flat = jnp.pad(x_flat, (0, n_padded - n))
    out2 = _run_tiled(x_flat.reshape(n_padded // _LANE, _LANE), scal)
    return out2.reshape(-1)[:n].reshape(orig_shape)


def _reference(x, multiplier):
    em = jnp.exp(jnp.asarray(multiplier, jnp.float32).reshape(()))
    return jnp.tanh(x / em) * em


if __name__ == "__main__":
    key = jax.random.PRNGKey(0)
    k1, k2, k3 = jax.random.split(key, 3)

    m_init = jnp.ones((1,), jnp.float32)          # module init: torch.ones((1,))

    # 1) Small activation whose last dim is NOT lane-aligned -> flatten/pad path.
    x_small = jax.random.normal(k1, (2, 32), jnp.float32)
    out = jax.block_until_ready(tanh_multiplier(x_small, m_init))
    ref = _reference(x_small, m_init)
    np.testing.assert_allclose(np.asarray(out), np.asarray(ref),
                               rtol=1e-5, atol=1e-5)

    # 2) Lane-aligned 2-D activations, non-unit multiplier -> direct tiled path
    #    (no pad/slice), grid split into >= 2 parallel steps.
    x_big = jax.random.normal(k2, (1024, 384), jnp.float32)
    m2 = jnp.asarray([0.5], jnp.float32)
    out2 = jax.block_until_ready(tanh_multiplier(x_big, m2))
    ref2 = _reference(x_big, m2)
    np.testing.assert_allclose(np.asarray(out2), np.asarray(ref2),
                               rtol=1e-5, atol=1e-5)

    # 3) bf16 activations streamed at native width (f32 compute inside kernel).
    x_bf16 = jax.random.normal(k3, (64, 256), jnp.float32).astype(jnp.bfloat16)
    out3 = jax.block_until_ready(tanh_multiplier(x_bf16, m_init))
    ref3 = _reference(x_bf16.astype(jnp.float32), m_init)
    np.testing.assert_allclose(np.asarray(out3.astype(jnp.float32)),
                               np.asarray(ref3),
                               rtol=2e-2, atol=2e-2)

    print("KERNEL_OK")
</pallas_src>

<mosaic_0001>
module attributes {stable_mosaic.version = 11 : i64} {
  func.func @_tanh_multiplier_kernel(%arg0: i32, %arg1: i32, %arg2: memref<2xf32, #tpu.memory_space<smem>>, %arg3: memref<1x1024xf32, #tpu.memory_space<vmem>>, %arg4: memref<1x1024xf32, #tpu.memory_space<vmem>>) attributes {dimension_semantics = [#tpu.dimension_semantics<parallel>, #tpu.dimension_semantics<parallel>], iteration_bounds = array<i64: 1, 1>, scalar_prefetch = 0 : i64, scratch_operands = 0 : i64, tpu.core_type = #tpu.core_type<tc>, window_params = [{transform_indices = @transform_0, window_bounds = array<i64: 2>}, {transform_indices = @transform_1, window_bounds = array<i64: 1, 1024>}, {transform_indices = @transform_2, window_bounds = array<i64: 1, 1024>}]} {
    %c0 = arith.constant 0 : index
    %0 = memref.load %arg2[%c0] : memref<2xf32, #tpu.memory_space<smem>>
    %c1 = arith.constant 1 : index
    %1 = memref.load %arg2[%c1] : memref<2xf32, #tpu.memory_space<smem>>
    %c0_0 = arith.constant 0 : index
    %c0_1 = arith.constant 0 : index
    %2 = vector.load %arg3[%c0_0, %c0_1] : memref<1x1024xf32, #tpu.memory_space<vmem>>, vector<1x1024xf32>
    %3 = vector.broadcast %1 : f32 to vector<1x1024xf32>
    %4 = arith.mulf %2, %3 : vector<1x1024xf32>
    %5 = math.tanh %4 : vector<1x1024xf32>
    %6 = vector.broadcast %0 : f32 to vector<1x1024xf32>
    %7 = arith.mulf %5, %6 : vector<1x1024xf32>
    %c0_2 = arith.constant 0 : index
    %c0_3 = arith.constant 0 : index
    %8 = vector.load %arg4[%c0_2, %c0_3] : memref<1x1024xf32, #tpu.memory_space<vmem>>, vector<1x1024xf32>
    tpu.vector_store %arg4[%c0_2, %c0_3], %7 {strides = array<i32>} : memref<1x1024xf32, #tpu.memory_space<vmem>>, vector<1x1024xf32>,
    return
  }
  func.func @transform_0(%arg0: i32, %arg1: i32) -> i32 {
    %c0_i32 = arith.constant 0 : i32
    %c0_i32_0 = arith.constant 0 : i32
    return %c0_i32 : i32
  }
  func.func @transform_1(%arg0: i32, %arg1: i32) -> (i32, i32) {
    %c0_i32 = arith.constant 0 : i32
    return %arg0, %arg1 : i32, i32
  }
  func.func @transform_2(%arg0: i32, %arg1: i32) -> (i32, i32) {
    %c0_i32 = arith.constant 0 : i32
    return %arg0, %arg1 : i32, i32
  }
}

</mosaic_0001>

<llo_original>
// kernel: tpu_custom_call.1
$region0: #{tpu_custom_call.1}
  #allocation0 [shape = 'u32[]', space=smem, size = 0x4, offset = 0x4, fixed_abs, tag = 'smem constant byte address 0x4 - core index']
  #allocation1 [shape = 'u32[72,128]{1,0:T(1,128)}', space=vmem, size = 0x9000, scoped, tag = 'internal scratch']
  %s0 = inlined_call_operand.hbm [shape: f32[2], index: 0, kind: input, shape index: {}]
  %s1 = inlined_call_operand.hbm [shape: f32[1,1024], index: 1, kind: input, shape index: {}]
  %s2 = inlined_call_operand.hbm [shape: f32[1,1024], index: 2, kind: output, shape index: {}]
  %s3 = sld [smem:[#allocation0]]
  $region26: #{tpu_custom_call.1} parent=0
    _
  %s5 = ssub.s32 1, %s3
  %s6 = scalar_select 0, %s5, %s3
  $region1: #{tpu_custom_call.1} parent=0
    #allocation2 [shape = 'u8[512]{0}', space=smem, size = 0x200, scoped, tag = 'input window, operand 0, single buffered']
    #allocation3 [shape = 's32[1]{0}', space=sflag, size = 0x4, scoped, tag = 'scoped memory for tpu_custom_call.1']
    #allocation4 [shape = 's32[1]{0}', space=sflag, size = 0x4, scoped, tag = 'scoped memory for tpu_custom_call.1']
    #allocation5 [shape = 's32[1]{0}', space=sflag, size = 0x4, scoped, tag = 'scoped memory for tpu_custom_call.1']
    #allocation6 [shape = 'u8[4096]{0}', space=vmem, size = 0x1000, scoped, tag = 'input window, operand 1, single buffered']
    #allocation7 [shape = 'u8[4096]{0}', space=vmem, size = 0x1000, scoped, tag = 'output window, operand 0, single buffered']
    %7 = vsyncpa [#allocation5], 0
    %8 = vsyncpa [#allocation3], 0
    %9 = vsyncpa [#allocation4], 0
    // Predicated region
    $region2: #{tpu_custom_call.1} parent=1 // pred_check
      _
    $region3: #{tpu_custom_call.1} parent=1 // pred_check_branch
      %11 = sbr.rel (0) target = $region5
    $region4: #{tpu_custom_call.1} parent=1 // pred_region
      %13 = vsyncadd [#allocation5], 0
      %s15 = sshll.u32 %s0, 4
      %s16 = int_to_ptr.hbm [resolvable:$true] %s15
      %18 = dma.hbm_to_smem %s16, 16, [#allocation2], [#allocation5]
    $region5: #{tpu_custom_call.1} parent=1 // pred_fallthru
      _
    // Predicated region
    $region6: #{tpu_custom_call.1} parent=1 // pred_check
      _
    $region7: #{tpu_custom_call.1} parent=1 // pred_check_branch
      %20 = sbr.rel (0) target = $region9
    $region8: #{tpu_custom_call.1} parent=1 // pred_region
      %22 = vsyncadd [#allocation3], 0
      %s24 = sshll.u32 %s1, 4
      %s25 = int_to_ptr.hbm [resolvable:$true] %s24
      %s26 = sshll.u32 [#allocation6], 4
      %s27 = int_to_ptr.vmem [resolvable:$true] %s26
      %29 = dma.hbm_to_vmem [thread:$0]  %s25, 128, %s27, [#allocation3]
    $region9: #{tpu_custom_call.1} parent=1 // pred_fallthru
      _
    // Predicated region
    $region10: #{tpu_custom_call.1} parent=1 // pred_check
      _
    $region11: #{tpu_custom_call.1} parent=1 // pred_check_branch
      %31 = sbr.rel (0) target = $region13
    $region12: #{tpu_custom_call.1} parent=1 // pred_region
      %33 = dma.done [#allocation5], 16
    $region13: #{tpu_custom_call.1} parent=1 // pred_fallthru
      _
    // Predicated region
    $region14: #{tpu_custom_call.1} parent=1 // pred_check
      _
    $region15: #{tpu_custom_call.1} parent=1 // pred_check_branch
      %35 = sbr.rel (0) target = $region17
    $region16: #{tpu_custom_call.1} parent=1 // pred_region
      %37 = dma.done [#allocation3], 128
    $region17: #{tpu_custom_call.1} parent=1 // pred_fallthru
      _
    %38 = sfence
    %s39 = sld [smem:[#allocation2]]
    %s40 = sld [smem:[#allocation2 + $0x1]]
    %v41 = vld [vmem:[#allocation6] sm:$0xff]
    %v42 = vstv %s40
    %v43 = vmul.f32 %v41, %v42
    %v44 = vtanh.pop %v43
    %v45 = vstv %s39
    %v46 = vmul.f32 %v44, %v45
    %47 = vst [vmem:[#allocation7] sm:$0xff] %v46
    // Predicated region
    $region18: #{tpu_custom_call.1} parent=1 // pred_check
      _
    $region19: #{tpu_custom_call.1} parent=1 // pred_check_branch
      %49 = sbr.rel (0) target = $region21
    $region20: #{tpu_custom_call.1} parent=1 // pred_region
      %51 = vsyncadd [#allocation4], 0
      %s53 = sshll.u32 [#allocation7], 4
      %s54 = int_to_ptr.vmem [resolvable:$true] %s53
      %s55 = sshll.u32 %s2, 4
      %s56 = int_to_ptr.hbm [resolvable:$true] %s55
      %58 = dma.vmem_to_hbm [thread:$0]  %s54, 128, %s56, [#allocation4]
    $region21: #{tpu_custom_call.1} parent=1 // pred_fallthru
      _
    // Predicated region
    $region22: #{tpu_custom_call.1} parent=1 // pred_check
      _
    $region23: #{tpu_custom_call.1} parent=1 // pred_check_branch
      %60 = sbr.rel (0) target = $region25
    $region24: #{tpu_custom_call.1} parent=1 // pred_region
      %62 = dma.done [#allocation4], 128
    $region25: #{tpu_custom_call.1} parent=1 // pred_fallthru
      _
    %63 = vsyncpa [#allocation3], 1
    %64 = vsyncpa [#allocation4], 1
    %65 = vsyncpa [#allocation5], 1

</llo_original>
